<compile_context>
chip_gen: v5e
topology: v5e:2x2
jax: 0.10.0
libtpu: 0.0.40
codegen_flags: <defaults>
</compile_context>

<pallas_src>
import functools

import jax
import jax.numpy as jnp
from jax.experimental import pallas as pl
from jax.experimental.pallas import tpu as pltpu


def attention_kernel(x_ref, wqkv_ref, wproj_ref, bproj_ref, o_ref, o_scratch,
                     *, num_heads, scale, mxu_dtype):
    """One grid step processes one batch element entirely in VMEM.

    x_ref:     (1, N, C)   in mxu_dtype
    wqkv_ref:  (C, 3C)     in mxu_dtype (no bias: qkv_bias=False)
    wproj_ref: (C, C)      in mxu_dtype
    bproj_ref: (1, C)      f32
    o_ref:     (1, N, C)   output dtype
    o_scratch: (N, C)      f32 VMEM scratch for the recombined head outputs
    """
    x = x_ref[0]                                  # (N, C)
    N, C = x.shape
    H = num_heads
    hd = C // H
    approx = (mxu_dtype == jnp.dtype(jnp.bfloat16))

    # --- fused QKV projection on the MXU (f32 accumulation) ---
    qkv = jnp.dot(x, wqkv_ref[...], preferred_element_type=jnp.float32)   # (N, 3C) f32

    # Column layout matches PyTorch's reshape(B,N,3,H,hd).permute(2,0,3,1,4):
    # column index along 3C = which*C + head*hd + d.
    q = qkv[:, :C] * scale
    k = qkv[:, C:2 * C]
    v = qkv[:, 2 * C:]

    # --- head split: (N, C) -> (H, N, hd), cast to the MXU input dtype ---
    def split_heads(t):
        return jnp.stack([t[:, h * hd:(h + 1) * hd] for h in range(H)],
                         axis=0).astype(mxu_dtype)

    q3 = split_heads(q)
    k3 = split_heads(k)
    v3 = split_heads(v)

    # --- batched scores: contract over hd on BOTH operands (no k.T materialized) ---
    s = jnp.einsum('hnd,hmd->hnm', q3, k3,
                   preferred_element_type=jnp.float32)           # (H, N, N) f32

    # --- max-stabilized softmax numerator; normalization deferred past PV ---
    m = jnp.max(s, axis=-1, keepdims=True)
    p = jnp.exp(s - m)                                           # (H, N, N) f32
    denom = jnp.sum(p, axis=-1, keepdims=True)                   # (H, N, 1)  f32
    # attn_drop is identity (p=0.0)

    # --- batched PV (unnormalized), then normalize on the narrow hd axis ---
    o3 = jnp.einsum('hnm,hmd->hnd', p.astype(mxu_dtype), v3,
                    preferred_element_type=jnp.float32)          # (H, N, hd) f32
    o3 = o3 * pl.reciprocal(denom, approx=approx)

    # --- scatter heads back into (N, C): plain lane-offset stores, no concat ---
    for h in range(H):
        o_scratch[:, h * hd:(h + 1) * hd] = o3[h]

    # --- output projection (+ bias). proj_drop is identity (p=0.0). ---
    y = jnp.dot(o_scratch[...].astype(mxu_dtype), wproj_ref[...],
                preferred_element_type=jnp.float32) + bproj_ref[...]
    o_ref[0] = y.astype(o_ref.dtype)


def attention_forward(x, w_qkv, w_proj, b_proj, *, num_heads, mxu_dtype=None):
    B, N, C = x.shape
    assert C % num_heads == 0
    out_dtype = x.dtype
    scale = (C // num_heads) ** (-0.5)
    mxu_dtype = jnp.dtype(out_dtype if mxu_dtype is None else mxu_dtype)

    # Cast MXU operands once in the wrapper (also halves their HBM->VMEM traffic on
    # the bf16 path). The bias is added in f32 after the f32-accumulated matmul.
    x = x.astype(mxu_dtype)
    w_qkv = w_qkv.astype(mxu_dtype)
    w_proj = w_proj.astype(mxu_dtype)
    b_proj = b_proj.astype(jnp.float32).reshape(1, C)

    kernel = functools.partial(attention_kernel, num_heads=num_heads, scale=scale,
                               mxu_dtype=mxu_dtype)
    return pl.pallas_call(
        kernel,
        out_shape=jax.ShapeDtypeStruct((B, N, C), out_dtype),
        grid=(B,),
        in_specs=[
            pl.BlockSpec((1, N, C), lambda b: (b, 0, 0)),   # x: one batch element per step
            # Weights/bias: constant index_map -> resident in VMEM, never re-DMA'd
            # across grid steps. (Single-buffering via pipeline_mode would trim dead
            # VMEM further on v7x; kept at the default for portability.)
            pl.BlockSpec((C, 3 * C), lambda b: (0, 0)),     # qkv weight (resident)
            pl.BlockSpec((C, C), lambda b: (0, 0)),         # proj weight (resident)
            pl.BlockSpec((1, C), lambda b: (0, 0)),         # proj bias
        ],
        out_specs=pl.BlockSpec((1, N, C), lambda b: (b, 0, 0)),
        scratch_shapes=[pltpu.VMEM((N, C), jnp.float32)],
        compiler_params=pltpu.CompilerParams(
            dimension_semantics=("parallel",),
            vmem_limit_bytes=64 * 1024 * 1024,
        ),
    )(x, w_qkv, w_proj, b_proj)


def attention_reference(x, w_qkv, w_proj, b_proj, *, num_heads):
    """Pure-JAX reference mirroring the PyTorch forward (f32)."""
    B, N, C = x.shape
    hd = C // num_heads
    scale = hd ** (-0.5)
    qkv = x @ w_qkv                                        # (B, N, 3C)
    qkv = qkv.reshape(B, N, 3, num_heads, hd).transpose(2, 0, 3, 1, 4)
    q, k, v = qkv[0], qkv[1], qkv[2]                       # (B, H, N, hd)
    attn = (q * scale) @ jnp.swapaxes(k, -2, -1)           # (B, H, N, N)
    attn = jax.nn.softmax(attn, axis=-1)
    out = (attn @ v).transpose(0, 2, 1, 3).reshape(B, N, C)
    return out @ w_proj + b_proj


if __name__ == "__main__":
    B, N, C = 2, 8, 32
    num_heads = 8

    key = jax.random.PRNGKey(0)
    kx, kw1, kw2, kb = jax.random.split(key, 4)

    x = jax.random.normal(kx, (B, N, C), dtype=jnp.float32)
    # Deterministic synthetic parameters (qkv has no bias since qkv_bias=False).
    w_qkv = jax.random.normal(kw1, (C, 3 * C), dtype=jnp.float32) * (1.0 / C ** 0.5)
    w_proj = jax.random.normal(kw2, (C, C), dtype=jnp.float32) * (1.0 / C ** 0.5)
    b_proj = jax.random.normal(kb, (C,), dtype=jnp.float32) * 0.1

    ref = attention_reference(x, w_qkv, w_proj, b_proj, num_heads=num_heads)

    # f32 MXU path: tight check against the pure-JAX reference.
    out = attention_forward(x, w_qkv, w_proj, b_proj, num_heads=num_heads)
    out = jax.block_until_ready(out)
    assert out.shape == (B, N, C)
    assert jnp.allclose(out, ref, atol=1e-4, rtol=1e-4), "f32 Pallas kernel mismatch vs reference"

    # bf16 MXU-input path (f32 accumulation) -- the fast path on v6e/v7x.
    out_bf16 = attention_forward(x, w_qkv, w_proj, b_proj, num_heads=num_heads,
                                 mxu_dtype=jnp.bfloat16)
    out_bf16 = jax.block_until_ready(out_bf16)
    assert jnp.allclose(out_bf16, ref, atol=2e-1, rtol=2e-1), "bf16 Pallas kernel mismatch vs reference"

    print("KERNEL_OK")
</pallas_src>

<mosaic_0001>
module attributes {stable_mosaic.version = 11 : i64} {
  func.func @attention_kernel(%arg0: i32, %arg1: memref<1x8x32xf32, #tpu.memory_space<vmem>>, %arg2: memref<32x96xf32, #tpu.memory_space<vmem>>, %arg3: memref<32x32xf32, #tpu.memory_space<vmem>>, %arg4: memref<1x32xf32, #tpu.memory_space<vmem>>, %arg5: memref<1x8x32xf32, #tpu.memory_space<vmem>>, %arg6: memref<8x32xf32, #tpu.memory_space<vmem>>) attributes {dimension_semantics = [#tpu.dimension_semantics<parallel>], iteration_bounds = array<i64: 2>, scalar_prefetch = 0 : i64, scratch_operands = 1 : i64, tpu.core_type = #tpu.core_type<tc>, window_params = [{transform_indices = @transform_0, window_bounds = array<i64: 1, 8, 32>}, {pipeline_mode = #tpu.pipeline_mode<synchronous>, transform_indices = @transform_1, window_bounds = array<i64: 32, 96>}, {pipeline_mode = #tpu.pipeline_mode<synchronous>, transform_indices = @transform_2, window_bounds = array<i64: 32, 32>}, {pipeline_mode = #tpu.pipeline_mode<synchronous>, transform_indices = @transform_3, window_bounds = array<i64: 1, 32>}, {transform_indices = @transform_4, window_bounds = array<i64: 1, 8, 32>}]} {
    %c0 = arith.constant 0 : index
    %c0_0 = arith.constant 0 : index
    %c0_1 = arith.constant 0 : index
    %0 = vector.load %arg1[%c0, %c0_0, %c0_1] : memref<1x8x32xf32, #tpu.memory_space<vmem>>, vector<1x8x32xf32>
    %1 = vector.shape_cast %0 : vector<1x8x32xf32> to vector<8x32xf32>
    %c0_2 = arith.constant 0 : index
    %c0_3 = arith.constant 0 : index
    %2 = vector.load %arg2[%c0_2, %c0_3] : memref<32x96xf32, #tpu.memory_space<vmem>>, vector<32x96xf32>
    %cst = arith.constant dense<0.000000e+00> : vector<8x96xf32>
    %3 = tpu.matmul %1, %2, %cst {dimension_numbers = #tpu.dot_dimension_numbers<[1], [0], [0], [1], [0, 0, 1, 1], [], []>} : vector<8x32xf32>, vector<32x96xf32>, vector<8x96xf32> -> vector<8x96xf32>
    %4 = vector.extract_strided_slice %3 {offsets = [0, 0], sizes = [8, 32], strides = [1, 1]} : vector<8x96xf32> to vector<8x32xf32>
    %cst_4 = arith.constant 5.000000e-01 : f32
    %5 = vector.broadcast %cst_4 : f32 to vector<8x32xf32>
    %6 = arith.mulf %4, %5 : vector<8x32xf32>
    %7 = vector.extract_strided_slice %3 {offsets = [0, 32], sizes = [8, 32], strides = [1, 1]} : vector<8x96xf32> to vector<8x32xf32>
    %8 = vector.extract_strided_slice %3 {offsets = [0, 64], sizes = [8, 32], strides = [1, 1]} : vector<8x96xf32> to vector<8x32xf32>
    %9 = vector.extract_strided_slice %6 {offsets = [0, 0], sizes = [8, 4], strides = [1, 1]} : vector<8x32xf32> to vector<8x4xf32>
    %10 = vector.extract_strided_slice %6 {offsets = [0, 4], sizes = [8, 4], strides = [1, 1]} : vector<8x32xf32> to vector<8x4xf32>
    %11 = vector.extract_strided_slice %6 {offsets = [0, 8], sizes = [8, 4], strides = [1, 1]} : vector<8x32xf32> to vector<8x4xf32>
    %12 = vector.extract_strided_slice %6 {offsets = [0, 12], sizes = [8, 4], strides = [1, 1]} : vector<8x32xf32> to vector<8x4xf32>
    %13 = vector.extract_strided_slice %6 {offsets = [0, 16], sizes = [8, 4], strides = [1, 1]} : vector<8x32xf32> to vector<8x4xf32>
    %14 = vector.extract_strided_slice %6 {offsets = [0, 20], sizes = [8, 4], strides = [1, 1]} : vector<8x32xf32> to vector<8x4xf32>
    %15 = vector.extract_strided_slice %6 {offsets = [0, 24], sizes = [8, 4], strides = [1, 1]} : vector<8x32xf32> to vector<8x4xf32>
    %16 = vector.extract_strided_slice %6 {offsets = [0, 28], sizes = [8, 4], strides = [1, 1]} : vector<8x32xf32> to vector<8x4xf32>
    %17 = vector.shape_cast %9 : vector<8x4xf32> to vector<1x8x4xf32>
    %18 = vector.shape_cast %10 : vector<8x4xf32> to vector<1x8x4xf32>
    %19 = vector.shape_cast %11 : vector<8x4xf32> to vector<1x8x4xf32>
    %20 = vector.shape_cast %12 : vector<8x4xf32> to vector<1x8x4xf32>
    %21 = vector.shape_cast %13 : vector<8x4xf32> to vector<1x8x4xf32>
    %22 = vector.shape_cast %14 : vector<8x4xf32> to vector<1x8x4xf32>
    %23 = vector.shape_cast %15 : vector<8x4xf32> to vector<1x8x4xf32>
    %24 = vector.shape_cast %16 : vector<8x4xf32> to vector<1x8x4xf32>
    %25 = tpu.concatenate %17, %18, %19, %20, %21, %22, %23, %24 in 0 : vector<1x8x4xf32>, vector<1x8x4xf32>, vector<1x8x4xf32>, vector<1x8x4xf32>, vector<1x8x4xf32>, vector<1x8x4xf32>, vector<1x8x4xf32>, vector<1x8x4xf32> -> vector<8x8x4xf32>
    %26 = vector.extract_strided_slice %7 {offsets = [0, 0], sizes = [8, 4], strides = [1, 1]} : vector<8x32xf32> to vector<8x4xf32>
    %27 = vector.extract_strided_slice %7 {offsets = [0, 4], sizes = [8, 4], strides = [1, 1]} : vector<8x32xf32> to vector<8x4xf32>
    %28 = vector.extract_strided_slice %7 {offsets = [0, 8], sizes = [8, 4], strides = [1, 1]} : vector<8x32xf32> to vector<8x4xf32>
    %29 = vector.extract_strided_slice %7 {offsets = [0, 12], sizes = [8, 4], strides = [1, 1]} : vector<8x32xf32> to vector<8x4xf32>
    %30 = vector.extract_strided_slice %7 {offsets = [0, 16], sizes = [8, 4], strides = [1, 1]} : vector<8x32xf32> to vector<8x4xf32>
    %31 = vector.extract_strided_slice %7 {offsets = [0, 20], sizes = [8, 4], strides = [1, 1]} : vector<8x32xf32> to vector<8x4xf32>
    %32 = vector.extract_strided_slice %7 {offsets = [0, 24], sizes = [8, 4], strides = [1, 1]} : vector<8x32xf32> to vector<8x4xf32>
    %33 = vector.extract_strided_slice %7 {offsets = [0, 28], sizes = [8, 4], strides = [1, 1]} : vector<8x32xf32> to vector<8x4xf32>
    %34 = vector.shape_cast %26 : vector<8x4xf32> to vector<1x8x4xf32>
    %35 = vector.shape_cast %27 : vector<8x4xf32> to vector<1x8x4xf32>
    %36 = vector.shape_cast %28 : vector<8x4xf32> to vector<1x8x4xf32>
    %37 = vector.shape_cast %29 : vector<8x4xf32> to vector<1x8x4xf32>
    %38 = vector.shape_cast %30 : vector<8x4xf32> to vector<1x8x4xf32>
    %39 = vector.shape_cast %31 : vector<8x4xf32> to vector<1x8x4xf32>
    %40 = vector.shape_cast %32 : vector<8x4xf32> to vector<1x8x4xf32>
    %41 = vector.shape_cast %33 : vector<8x4xf32> to vector<1x8x4xf32>
    %42 = tpu.concatenate %34, %35, %36, %37, %38, %39, %40, %41 in 0 : vector<1x8x4xf32>, vector<1x8x4xf32>, vector<1x8x4xf32>, vector<1x8x4xf32>, vector<1x8x4xf32>, vector<1x8x4xf32>, vector<1x8x4xf32>, vector<1x8x4xf32> -> vector<8x8x4xf32>
    %43 = vector.extract_strided_slice %8 {offsets = [0, 0], sizes = [8, 4], strides = [1, 1]} : vector<8x32xf32> to vector<8x4xf32>
    %44 = vector.extract_strided_slice %8 {offsets = [0, 4], sizes = [8, 4], strides = [1, 1]} : vector<8x32xf32> to vector<8x4xf32>
    %45 = vector.extract_strided_slice %8 {offsets = [0, 8], sizes = [8, 4], strides = [1, 1]} : vector<8x32xf32> to vector<8x4xf32>
    %46 = vector.extract_strided_slice %8 {offsets = [0, 12], sizes = [8, 4], strides = [1, 1]} : vector<8x32xf32> to vector<8x4xf32>
    %47 = vector.extract_strided_slice %8 {offsets = [0, 16], sizes = [8, 4], strides = [1, 1]} : vector<8x32xf32> to vector<8x4xf32>
    %48 = vector.extract_strided_slice %8 {offsets = [0, 20], sizes = [8, 4], strides = [1, 1]} : vector<8x32xf32> to vector<8x4xf32>
    %49 = vector.extract_strided_slice %8 {offsets = [0, 24], sizes = [8, 4], strides = [1, 1]} : vector<8x32xf32> to vector<8x4xf32>
    %50 = vector.extract_strided_slice %8 {offsets = [0, 28], sizes = [8, 4], strides = [1, 1]} : vector<8x32xf32> to vector<8x4xf32>
    %51 = vector.shape_cast %43 : vector<8x4xf32> to vector<1x8x4xf32>
    %52 = vector.shape_cast %44 : vector<8x4xf32> to vector<1x8x4xf32>
    %53 = vector.shape_cast %45 : vector<8x4xf32> to vector<1x8x4xf32>
    %54 = vector.shape_cast %46 : vector<8x4xf32> to vector<1x8x4xf32>
    %55 = vector.shape_cast %47 : vector<8x4xf32> to vector<1x8x4xf32>
    %56 = vector.shape_cast %48 : vector<8x4xf32> to vector<1x8x4xf32>
    %57 = vector.shape_cast %49 : vector<8x4xf32> to vector<1x8x4xf32>
    %58 = vector.shape_cast %50 : vector<8x4xf32> to vector<1x8x4xf32>
    %59 = tpu.concatenate %51, %52, %53, %54, %55, %56, %57, %58 in 0 : vector<1x8x4xf32>, vector<1x8x4xf32>, vector<1x8x4xf32>, vector<1x8x4xf32>, vector<1x8x4xf32>, vector<1x8x4xf32>, vector<1x8x4xf32>, vector<1x8x4xf32> -> vector<8x8x4xf32>
    "tpu.trace_start"() <{level = 10 : i32, message = "hnd,hmd->hnm"}> : () -> ()
    %cst_5 = arith.constant dense<0.000000e+00> : vector<8x8x8xf32>
    %60 = tpu.matmul %25, %42, %cst_5 {dimension_numbers = #tpu.dot_dimension_numbers<[2], [2], [1], [1], [0, 0, 0, 1, 1, 1], [0], [0]>} : vector<8x8x4xf32>, vector<8x8x4xf32>, vector<8x8x8xf32> -> vector<8x8x8xf32>
    "tpu.trace_stop"() : () -> ()
    %cst_6 = arith.constant dense<0xFF800000> : vector<8x8xf32>
    %61 = vector.multi_reduction <maximumf>, %60, %cst_6 [2] : vector<8x8x8xf32> to vector<8x8xf32>
    %62 = vector.shape_cast %61 : vector<8x8xf32> to vector<8x8x1xf32>
    %63 = vector.broadcast %62 : vector<8x8x1xf32> to vector<8x8x8xf32>
    %64 = arith.subf %60, %63 : vector<8x8x8xf32>
    %65 = math.exp %64 : vector<8x8x8xf32>
    %cst_7 = arith.constant dense<0.000000e+00> : vector<8x8xf32>
    %66 = vector.multi_reduction <add>, %65, %cst_7 [2] : vector<8x8x8xf32> to vector<8x8xf32>
    %67 = vector.shape_cast %66 : vector<8x8xf32> to vector<8x8x1xf32>
    "tpu.trace_start"() <{level = 10 : i32, message = "hnm,hmd->hnd"}> : () -> ()
    %cst_8 = arith.constant dense<0.000000e+00> : vector<8x8x4xf32>
    %68 = tpu.matmul %65, %59, %cst_8 {dimension_numbers = #tpu.dot_dimension_numbers<[2], [1], [1], [2], [0, 0, 0, 1, 1, 2], [0], [0]>} : vector<8x8x8xf32>, vector<8x8x4xf32>, vector<8x8x4xf32> -> vector<8x8x4xf32>
    "tpu.trace_stop"() : () -> ()
    %69 = tpu.reciprocal %67 : vector<8x8x1xf32> -> vector<8x8x1xf32>
    %70 = vector.broadcast %69 : vector<8x8x1xf32> to vector<8x8x4xf32>
    %71 = arith.mulf %68, %70 : vector<8x8x4xf32>
    %72 = vector.extract_strided_slice %71 {offsets = [0, 0, 0], sizes = [1, 8, 4], strides = [1, 1, 1]} : vector<8x8x4xf32> to vector<1x8x4xf32>
    %73 = vector.shape_cast %72 : vector<1x8x4xf32> to vector<8x4xf32>
    %c0_9 = arith.constant 0 : index
    %c0_10 = arith.constant 0 : index
    %74 = vector.load %arg6[%c0_9, %c0_10] : memref<8x32xf32, #tpu.memory_space<vmem>>, vector<8x4xf32>
    tpu.vector_store %arg6[%c0_9, %c0_10], %73 {strides = array<i32>} : memref<8x32xf32, #tpu.memory_space<vmem>>, vector<8x4xf32>,
    %75 = vector.extract_strided_slice %71 {offsets = [1, 0, 0], sizes = [1, 8, 4], strides = [1, 1, 1]} : vector<8x8x4xf32> to vector<1x8x4xf32>
    %76 = vector.shape_cast %75 : vector<1x8x4xf32> to vector<8x4xf32>
    %c0_11 = arith.constant 0 : index
    %c4 = arith.constant 4 : index
    %77 = vector.load %arg6[%c0_11, %c4] : memref<8x32xf32, #tpu.memory_space<vmem>>, vector<8x4xf32>
    tpu.vector_store %arg6[%c0_11, %c4], %76 {strides = array<i32>} : memref<8x32xf32, #tpu.memory_space<vmem>>, vector<8x4xf32>,
    %78 = vector.extract_strided_slice %71 {offsets = [2, 0, 0], sizes = [1, 8, 4], strides = [1, 1, 1]} : vector<8x8x4xf32> to vector<1x8x4xf32>
    %79 = vector.shape_cast %78 : vector<1x8x4xf32> to vector<8x4xf32>
    %c0_12 = arith.constant 0 : index
    %c8 = arith.constant 8 : index
    %80 = vector.load %arg6[%c0_12, %c8] : memref<8x32xf32, #tpu.memory_space<vmem>>, vector<8x4xf32>
    tpu.vector_store %arg6[%c0_12, %c8], %79 {strides = array<i32>} : memref<8x32xf32, #tpu.memory_space<vmem>>, vector<8x4xf32>,
    %81 = vector.extract_strided_slice %71 {offsets = [3, 0, 0], sizes = [1, 8, 4], strides = [1, 1, 1]} : vector<8x8x4xf32> to vector<1x8x4xf32>
    %82 = vector.shape_cast %81 : vector<1x8x4xf32> to vector<8x4xf32>
    %c0_13 = arith.constant 0 : index
    %c12 = arith.constant 12 : index
    %83 = vector.load %arg6[%c0_13, %c12] : memref<8x32xf32, #tpu.memory_space<vmem>>, vector<8x4xf32>
    tpu.vector_store %arg6[%c0_13, %c12], %82 {strides = array<i32>} : memref<8x32xf32, #tpu.memory_space<vmem>>, vector<8x4xf32>,
    %84 = vector.extract_strided_slice %71 {offsets = [4, 0, 0], sizes = [1, 8, 4], strides = [1, 1, 1]} : vector<8x8x4xf32> to vector<1x8x4xf32>
    %85 = vector.shape_cast %84 : vector<1x8x4xf32> to vector<8x4xf32>
    %c0_14 = arith.constant 0 : index
    %c16 = arith.constant 16 : index
    %86 = vector.load %arg6[%c0_14, %c16] : memref<8x32xf32, #tpu.memory_space<vmem>>, vector<8x4xf32>
    tpu.vector_store %arg6[%c0_14, %c16], %85 {strides = array<i32>} : memref<8x32xf32, #tpu.memory_space<vmem>>, vector<8x4xf32>,
    %87 = vector.extract_strided_slice %71 {offsets = [5, 0, 0], sizes = [1, 8, 4], strides = [1, 1, 1]} : vector<8x8x4xf32> to vector<1x8x4xf32>
    %88 = vector.shape_cast %87 : vector<1x8x4xf32> to vector<8x4xf32>
    %c0_15 = arith.constant 0 : index
    %c20 = arith.constant 20 : index
    %89 = vector.load %arg6[%c0_15, %c20] : memref<8x32xf32, #tpu.memory_space<vmem>>, vector<8x4xf32>
    tpu.vector_store %arg6[%c0_15, %c20], %88 {strides = array<i32>} : memref<8x32xf32, #tpu.memory_space<vmem>>, vector<8x4xf32>,
    %90 = vector.extract_strided_slice %71 {offsets = [6, 0, 0], sizes = [1, 8, 4], strides = [1, 1, 1]} : vector<8x8x4xf32> to vector<1x8x4xf32>
    %91 = vector.shape_cast %90 : vector<1x8x4xf32> to vector<8x4xf32>
    %c0_16 = arith.constant 0 : index
    %c24 = arith.constant 24 : index
    %92 = vector.load %arg6[%c0_16, %c24] : memref<8x32xf32, #tpu.memory_space<vmem>>, vector<8x4xf32>
    tpu.vector_store %arg6[%c0_16, %c24], %91 {strides = array<i32>} : memref<8x32xf32, #tpu.memory_space<vmem>>, vector<8x4xf32>,
    %93 = vector.extract_strided_slice %71 {offsets = [7, 0, 0], sizes = [1, 8, 4], strides = [1, 1, 1]} : vector<8x8x4xf32> to vector<1x8x4xf32>
    %94 = vector.shape_cast %93 : vector<1x8x4xf32> to vector<8x4xf32>
    %c0_17 = arith.constant 0 : index
    %c28 = arith.constant 28 : index
    %95 = vector.load %arg6[%c0_17, %c28] : memref<8x32xf32, #tpu.memory_space<vmem>>, vector<8x4xf32>
    tpu.vector_store %arg6[%c0_17, %c28], %94 {strides = array<i32>} : memref<8x32xf32, #tpu.memory_space<vmem>>, vector<8x4xf32>,
    %c0_18 = arith.constant 0 : index
    %c0_19 = arith.constant 0 : index
    %96 = vector.load %arg6[%c0_18, %c0_19] : memref<8x32xf32, #tpu.memory_space<vmem>>, vector<8x32xf32>
    %c0_20 = arith.constant 0 : index
    %c0_21 = arith.constant 0 : index
    %97 = vector.load %arg3[%c0_20, %c0_21] : memref<32x32xf32, #tpu.memory_space<vmem>>, vector<32x32xf32>
    %cst_22 = arith.constant dense<0.000000e+00> : vector<8x32xf32>
    %98 = tpu.matmul %96, %97, %cst_22 {dimension_numbers = #tpu.dot_dimension_numbers<[1], [0], [0], [1], [0, 0, 1, 1], [], []>} : vector<8x32xf32>, vector<32x32xf32>, vector<8x32xf32> -> vector<8x32xf32>
    %c0_23 = arith.constant 0 : index
    %c0_24 = arith.constant 0 : index
    %99 = vector.load %arg4[%c0_23, %c0_24] : memref<1x32xf32, #tpu.memory_space<vmem>>, vector<1x32xf32>
    %100 = vector.broadcast %99 : vector<1x32xf32> to vector<8x32xf32>
    %101 = arith.addf %98, %100 : vector<8x32xf32>
    %c0_25 = arith.constant 0 : index
    %c0_26 = arith.constant 0 : index
    %c0_27 = arith.constant 0 : index
    %102 = vector.load %arg5[%c0_25, %c0_26, %c0_27] : memref<1x8x32xf32, #tpu.memory_space<vmem>>, vector<1x8x32xf32>
    %103 = vector.shape_cast %102 : vector<1x8x32xf32> to vector<8x32xf32>
    %104 = vector.shape_cast %101 : vector<8x32xf32> to vector<1x8x32xf32>
    tpu.vector_store %arg5[%c0_25, %c0_26, %c0_27], %104 {strides = array<i32>} : memref<1x8x32xf32, #tpu.memory_space<vmem>>, vector<1x8x32xf32>,
    return
  }
  func.func @transform_0(%arg0: i32) -> (i32, i32, i32) {
    %c0_i32 = arith.constant 0 : i32
    %c0_i32_0 = arith.constant 0 : i32
    %c0_i32_1 = arith.constant 0 : i32
    return %arg0, %c0_i32, %c0_i32_0 : i32, i32, i32
  }
  func.func @transform_1(%arg0: i32) -> (i32, i32) {
    %c0_i32 = arith.constant 0 : i32
    %c0_i32_0 = arith.constant 0 : i32
    %c0_i32_1 = arith.constant 0 : i32
    return %c0_i32, %c0_i32_0 : i32, i32
  }
  func.func @transform_2(%arg0: i32) -> (i32, i32) {
    %c0_i32 = arith.constant 0 : i32
    %c0_i32_0 = arith.constant 0 : i32
    %c0_i32_1 = arith.constant 0 : i32
    return %c0_i32, %c0_i32_0 : i32, i32
  }
  func.func @transform_3(%arg0: i32) -> (i32, i32) {
    %c0_i32 = arith.constant 0 : i32
    %c0_i32_0 = arith.constant 0 : i32
    %c0_i32_1 = arith.constant 0 : i32
    return %c0_i32, %c0_i32_0 : i32, i32
  }
  func.func @transform_4(%arg0: i32) -> (i32, i32, i32) {
    %c0_i32 = arith.constant 0 : i32
    %c0_i32_0 = arith.constant 0 : i32
    %c0_i32_1 = arith.constant 0 : i32
    return %arg0, %c0_i32, %c0_i32_0 : i32, i32, i32
  }
}

</mosaic_0001>

<llo_original>
// kernel: tpu_custom_call.1
$region0: #{tpu_custom_call.1}
  #allocation0 [shape = 'u32[]', space=smem, size = 0x4, offset = 0x4, fixed_abs, tag = 'smem constant byte address 0x4 - core index']
  #allocation1 [shape = 'u32[72,128]{1,0:T(1,128)}', space=vmem, size = 0x9000, scoped, tag = 'internal scratch']
  #allocation2 [shape = 'f32[8,32]{1,0:T(8,128)}', space=vmem, size = 0x1000, scoped, tag = 'scratch operand']
  %s0 = inlined_call_operand.hbm [shape: f32[2,8,32], index: 0, kind: input, shape index: {}]
  %s1 = inlined_call_operand.hbm [shape: f32[32,96], index: 1, kind: input, shape index: {}]
  %s2 = inlined_call_operand.hbm [shape: f32[32,32], index: 2, kind: input, shape index: {}]
  %s3 = inlined_call_operand.vmem [shape: f32[1,32], index: 3, kind: input, shape index: {}]
  %s4 = inlined_call_operand.hbm [shape: f32[2,8,32], index: 4, kind: output, shape index: {}]
  %s5 = sld [smem:[#allocation0]]
  $region61: #{tpu_custom_call.1} parent=0
    _
  %s7 = ssub.s32 1, %s5
  %s8 = scalar_select 0, %s7, %s5
  $region1: #{tpu_custom_call.1} parent=0
    #allocation3 [shape = 'u8[8192]{0}', space=vmem, size = 0x2000, scoped, tag = 'input window, operand 0']
    #allocation4 [shape = 's32[2]{0}', space=sflag, size = 0x8, scoped, tag = 'scoped memory for tpu_custom_call.1']
    #allocation5 [shape = 's32[2]{0}', space=sflag, size = 0x8, scoped, tag = 'scoped memory for tpu_custom_call.1']
    #allocation6 [shape = 'u8[16384]{0}', space=vmem, size = 0x4000, scoped, tag = 'input window, operand 1, single buffered']
    #allocation7 [shape = 's32[1]{0}', space=sflag, size = 0x4, scoped, tag = 'scoped memory for tpu_custom_call.1']
    #allocation8 [shape = 'u8[16384]{0}', space=vmem, size = 0x4000, scoped, tag = 'input window, operand 2, single buffered']
    #allocation9 [shape = 'u8[8192]{0}', space=vmem, size = 0x2000, scoped, tag = 'output window, operand 0']
    %9 = vsyncpa [#allocation4], 0
    %s10 = scalar_lea.sflag [#allocation4], 1
    %11 = vsyncpa %s10, 0
    %12 = vsyncpa [#allocation7], 0
    %13 = vsyncpa [#allocation5], 0
    %s14 = scalar_lea.sflag [#allocation5], 1
    %15 = vsyncpa %s14, 0
    loop: start=0, step=1, limit=4
    $region2: #{tpu_custom_call.1} parent=1 // loop_pre_header
      _
    $region3: #{tpu_custom_call.1} parent=1 // loop_header
      %s17 = sphi 0, %s21
      %p18 = scmp.ge.s32.totalorder %s17, 4
      %s27 = sphi 0, %s29
      %s30 = sphi 0, %s27
      %s31 = sphi 0, %s30
      %s47 = sphi 0, %s31
      %s51 = sphi 0, %s51
      %s53 = sphi 0, %s51
      %s54 = sphi 0, %s53
      %s68 = sphi 0, %s54
      %s72 = sphi 0, %s72
      %s74 = sphi 0, %s72
      %s75 = sphi 0, %s74
      %s89 = sphi 0, %s75
      %s93 = sphi 0, %s93
      %s95 = sphi 0, %s93
      %s96 = sphi 0, %s95
      %s110 = sphi 0, %s96
      %s116 = sphi 0, %s118
      %s119 = sphi 0, %s116
      %s120 = sphi 0, %s119
      %s136 = sphi 0, %s120
    $region4: #{tpu_custom_call.1} parent=1 // loop_header_branch
      %20 = sbr.rel (%p18) target = $region8
    $region5: #{tpu_custom_call.1} parent=1 // loop_body
      %s22 = ssub.s32 %s17, 1
      %s23 = ssub.s32 %s17, 2
      %s24 = sadd.s32 %s17, 1
      %s25 = ssub.s32 %s17, %s24
      %p26 = scmp.eq.s32.totalorder %s25, 0
      %s28 = sadd.s32 %s27, 1
      %s29 = scalar_select %p26, %s27, %s28
      %p32 = pneg %p26
      %p33 = scmp.eq.s32.totalorder %s17, 1
      %p34 = por %p32, %p33
      %p35 = scmp.ne.s32.totalorder %s27, %s30
      %p36 = scmp.eq.s32.totalorder %s17, 0
      %p37 = por %p35, %p36
      %p38 = scmp.ne.s32.totalorder %s27, %s30
      %p39 = scmp.eq.s32.totalorder %s22, 1
      %p40 = por %p38, %p39
      %p41 = scmp.ne.s32.totalorder %s30, %s31
      %p42 = scmp.eq.s32.totalorder %s22, 0
      %p43 = por %p41, %p42
      %p44 = scmp.ne.s32.totalorder %s30, %s31
      %p45 = scmp.eq.s32.totalorder %s23, 1
      %p46 = por %p44, %p45
      %p48 = scmp.ne.s32.totalorder %s31, %s47
      %p49 = scmp.eq.s32.totalorder %s23, 0
      %p50 = por %p48, %p49
      %s52 = sadd.s32 %s51, 1
      %p55 = scmp.eq.s32.totalorder %s17, 1
      %p56 = scmp.ne.s32.totalorder %s51, %s53
      %p57 = scmp.eq.s32.totalorder %s17, 0
      %p58 = por %p56, %p57
      %p59 = scmp.ne.s32.totalorder %s51, %s53
      %p60 = scmp.eq.s32.totalorder %s22, 1
      %p61 = por %p59, %p60
      %p62 = scmp.ne.s32.totalorder %s53, %s54
      %p63 = scmp.eq.s32.totalorder %s22, 0
      %p64 = por %p62, %p63
      %p65 = scmp.ne.s32.totalorder %s53, %s54
      %p66 = scmp.eq.s32.totalorder %s23, 1
      %p67 = por %p65, %p66
      %p69 = scmp.ne.s32.totalorder %s54, %s68
      %p70 = scmp.eq.s32.totalorder %s23, 0
      %p71 = por %p69, %p70
      %s73 = sadd.s32 %s72, 1
      %p76 = scmp.eq.s32.totalorder %s17, 1
      %p77 = scmp.ne.s32.totalorder %s72, %s74
      %p78 = scmp.eq.s32.totalorder %s17, 0
      %p79 = por %p77, %p78
      %p80 = scmp.ne.s32.totalorder %s72, %s74
      %p81 = scmp.eq.s32.totalorder %s22, 1
      %p82 = por %p80, %p81
      %p83 = scmp.ne.s32.totalorder %s74, %s75
      %p84 = scmp.eq.s32.totalorder %s22, 0
      %p85 = por %p83, %p84
      %p86 = scmp.ne.s32.totalorder %s74, %s75
      %p87 = scmp.eq.s32.totalorder %s23, 1
      %p88 = por %p86, %p87
      %p90 = scmp.ne.s32.totalorder %s75, %s89
      %p91 = scmp.eq.s32.totalorder %s23, 0
      %p92 = por %p90, %p91
      %s94 = sadd.s32 %s93, 1
      %p97 = scmp.eq.s32.totalorder %s17, 1
      %p98 = scmp.ne.s32.totalorder %s93, %s95
      %p99 = scmp.eq.s32.totalorder %s17, 0
      %p100 = por %p98, %p99
      %p101 = scmp.ne.s32.totalorder %s93, %s95
      %p102 = scmp.eq.s32.totalorder %s22, 1
      %p103 = por %p101, %p102
      %p104 = scmp.ne.s32.totalorder %s95, %s96
      %p105 = scmp.eq.s32.totalorder %s22, 0
      %p106 = por %p104, %p105
      %p107 = scmp.ne.s32.totalorder %s95, %s96
      %p108 = scmp.eq.s32.totalorder %s23, 1
      %p109 = por %p107, %p108
      %p111 = scmp.ne.s32.totalorder %s96, %s110
      %p112 = scmp.eq.s32.totalorder %s23, 0
      %p113 = por %p111, %p112
      %s114 = ssub.s32 %s17, %s24
      %p115 = scmp.eq.s32.totalorder %s114, 0
      %s117 = sadd.s32 %s116, 1
      %s118 = scalar_select %p115, %s116, %s117
      %p121 = pneg %p115
      %p122 = scmp.eq.s32.totalorder %s17, 1
      %p123 = por %p121, %p122
      %p124 = scmp.ne.s32.totalorder %s116, %s119
      %p125 = scmp.eq.s32.totalorder %s17, 0
      %p126 = por %p124, %p125
      %p127 = scmp.ne.s32.totalorder %s116, %s119
      %p128 = scmp.eq.s32.totalorder %s22, 1
      %p129 = por %p127, %p128
      %p130 = scmp.ne.s32.totalorder %s119, %s120
      %p131 = scmp.eq.s32.totalorder %s22, 0
      %p132 = por %p130, %p131
      %p133 = scmp.ne.s32.totalorder %s119, %s120
      %p134 = scmp.eq.s32.totalorder %s23, 1
      %p135 = por %p133, %p134
      %p137 = scmp.ne.s32.totalorder %s120, %s136
      %p138 = scmp.eq.s32.totalorder %s23, 0
      %p139 = por %p137, %p138
      %p140 = scmp.le.s32.totalorder 1, %s17
      %p141 = scmp.lt.s32.totalorder %s17, 3
      %p142 = pnand %p140, %p141
      %p143 = pneg %p142
      // Predicated region
      $region9: #{tpu_custom_call.1} parent=5 // pred_check
        _
      $region10: #{tpu_custom_call.1} parent=5 // pred_check_branch
        %145 = sbr.rel (%p142) target = $region12
      $region11: #{tpu_custom_call.1} parent=5 // pred_region
        %s146 = ssub.s32 %s17, 1
        // Predicated region
        $region13: #{tpu_custom_call.1} parent=11 // pred_check
          %p147 = pneg %p64
        $region14: #{tpu_custom_call.1} parent=11 // pred_check_branch
          %149 = sbr.rel (%p147) target = $region16
        $region15: #{tpu_custom_call.1} parent=11 // pred_region
          %151 = vsyncadd [#allocation7], 0
          %s152 = sshll.u32 %s1, 4
          %s153 = int_to_ptr.hbm [resolvable:$true] %s152
          %s154 = sshll.u32 [#allocation6], 4
          %s155 = int_to_ptr.vmem [resolvable:$true] %s154
          %160 = dma.hbm_to_vmem [thread:$0]  %s153, 512, %s155, [#allocation7], 128, 128, 8
        $region16: #{tpu_custom_call.1} parent=11 // pred_fallthru
          _
        // Predicated region
        $region17: #{tpu_custom_call.1} parent=11 // pred_check
          %p161 = pneg %p85
        $region18: #{tpu_custom_call.1} parent=11 // pred_check_branch
          %163 = sbr.rel (%p161) target = $region20
        $region19: #{tpu_custom_call.1} parent=11 // pred_region
          %165 = vsyncadd [#allocation7], 0
          %s166 = sshll.u32 %s2, 4
          %s167 = int_to_ptr.hbm [resolvable:$true] %s166
          %s168 = sshll.u32 [#allocation8], 4
          %s169 = int_to_ptr.vmem [resolvable:$true] %s168
          %174 = dma.hbm_to_vmem [thread:$0]  %s167, 512, %s169, [#allocation7], 128, 128, 8
        $region20: #{tpu_custom_call.1} parent=11 // pred_fallthru
          _
        // Predicated region
        $region21: #{tpu_custom_call.1} parent=11 // pred_check
          %p175 = pneg %p106
        $region22: #{tpu_custom_call.1} parent=11 // pred_check_branch
          %177 = sbr.rel (%p175) target = $region24
        $region23: #{tpu_custom_call.1} parent=11 // pred_region
          _
        $region24: #{tpu_custom_call.1} parent=11 // pred_fallthru
          _
      $region12: #{tpu_custom_call.1} parent=5 // pred_fallthru
        _
      %p178 = scmp.lt.s32.totalorder %s17, 2
      // Predicated region
      $region25: #{tpu_custom_call.1} parent=5 // pred_check
        %p179 = pneg %p178
      $region26: #{tpu_custom_call.1} parent=5 // pred_check_branch
        %181 = sbr.rel (%p179) target = $region28
      $region27: #{tpu_custom_call.1} parent=5 // pred_region
        // Predicated region
        $region29: #{tpu_custom_call.1} parent=27 // pred_check
          %p182 = pneg %p37
        $region30: #{tpu_custom_call.1} parent=27 // pred_check_branch
          %184 = sbr.rel (%p182) target = $region32
        $region31: #{tpu_custom_call.1} parent=27 // pred_region
          %s185 = sand.u32 %s27, 1
          %s186 = scalar_lea.sflag [#allocation4], %s185
          %s187 = sand.u32 %s27, 1
          %s188 = smul.addr %s187, 8
          %s189 = scalar_lea.vmem [#allocation3], %s188
          %191 = vsyncadd %s186, 0
          %s192 = smul.addr %s17, 8
          %s193 = scalar_lea.hbm %s0, %s192
          %s195 = sshll.u32 %s193, 4
          %s196 = int_to_ptr.hbm [resolvable:$true] %s195
          %s197 = sshll.u32 %s189, 4
          %s198 = int_to_ptr.vmem [resolvable:$true] %s197
          %200 = dma.hbm_to_vmem [thread:$0]  %s196, 128, %s198, %s186
        $region32: #{tpu_custom_call.1} parent=27 // pred_fallthru
          _
      $region28: #{tpu_custom_call.1} parent=5 // pred_fallthru
        _
      %p201 = scmp.le.s32.totalorder 1, %s17
      %p202 = scmp.lt.s32.totalorder %s17, 3
      %p203 = pnand %p201, %p202
      %p204 = pneg %p203
      // Predicated region
      $region33: #{tpu_custom_call.1} parent=5 // pred_check
        _
      $region34: #{tpu_custom_call.1} parent=5 // pred_check_branch
        %206 = sbr.rel (%p203) target = $region36
      $region35: #{tpu_custom_call.1} parent=5 // pred_region
        %s207 = ssub.s32 %s17, 1
        %s208 = sand.u32 %s30, 1
        %s209 = scalar_lea.sflag [#allocation4], %s208
        %s210 = sand.u32 %s30, 1
        %s211 = smul.addr %s210, 8
        %s212 = scalar_lea.vmem [#allocation3], %s211
        // Predicated region
        $region37: #{tpu_custom_call.1} parent=35 // pred_check
          %p213 = pneg %p43
        $region38: #{tpu_custom_call.1} parent=35 // pred_check_branch
          %215 = sbr.rel (%p213) target = $region40
        $region39: #{tpu_custom_call.1} parent=35 // pred_region
          %217 = dma.done %s209, 128
        $region40: #{tpu_custom_call.1} parent=35 // pred_fallthru
          _
        // Predicated region
        $region41: #{tpu_custom_call.1} parent=35 // pred_check
          %p218 = pneg %p64
        $region42: #{tpu_custom_call.1} parent=35 // pred_check_branch
          %220 = sbr.rel (%p218) target = $region44
        $region43: #{tpu_custom_call.1} parent=35 // pred_region
          %222 = dma.done [#allocation7], 512
        $region44: #{tpu_custom_call.1} parent=35 // pred_fallthru
          _
        // Predicated region
        $region45: #{tpu_custom_call.1} parent=35 // pred_check
          %p223 = pneg %p85
        $region46: #{tpu_custom_call.1} parent=35 // pred_check_branch
          %225 = sbr.rel (%p223) target = $region48
        $region47: #{tpu_custom_call.1} parent=35 // pred_region
          %227 = dma.done [#allocation7], 512
        $region48: #{tpu_custom_call.1} parent=35 // pred_fallthru
          _
        %s228 = sand.u32 %s30, 1
        %s229 = scalar_lea.sflag [#allocation4], %s228
        %s230 = sand.u32 %s30, 1
        %s231 = smul.addr %s230, 8
        %s232 = scalar_lea.vmem [#allocation3], %s231
        %p233 = pneg %p43
        %p234 = pneg %p40
        %p235 = pneg %p64
        %p236 = pneg %p61
        %p237 = pneg %p85
        %p238 = pneg %p82
        %p239 = pneg %p106
        %p240 = pneg %p103
        %p241 = pneg %p132
        %p242 = pneg %p129
        %s243 = sand.u32 %s119, 1
        %s244 = scalar_lea.sflag [#allocation5], %s243
        %s245 = sand.u32 %s119, 1
        %s246 = smul.addr %s245, 8
        %s247 = scalar_lea.vmem [#allocation9], %s246
        %v248 = vld [vmem:[%s212] sm:$0xff]
        %v249 = vld [vmem:[#allocation6] sm:$0xff]
        %v250 = vld [vmem:[#allocation6 + $0x8] sm:$0xff]
        %v251 = vld [vmem:[#allocation6 + $0x10] sm:$0xff]
        %v252 = vld [vmem:[#allocation6 + $0x18] sm:$0xff]
        %vm253 = vcmask 261120
        %v255 = vsel %vm253, %v248, 0
        %257 = vmatpush.msra.mxu0 0.0
        %258 = vmatpush.msra.mxu0 0.0
        %259 = vmatpush.msra.mxu0 0.0
        %260 = vmatpush.msra.mxu0 0.0
        %261 = vmatpush.msra.mxu0 0.0
        %262 = vmatpush.msra.mxu0 0.0
        %263 = vmatpush.msra.mxu0 0.0
        %264 = vmatpush.msra.mxu0 0.0
        %265 = vmatpush.msra.mxu0 0.0
        %266 = vmatpush.msra.mxu0 0.0
        %267 = vmatpush.msra.mxu0 0.0
        %268 = vmatpush.msra.mxu0 0.0
        %269 = vmatpush.msra.mxu0 %v252
        %270 = vmatpush.msra.mxu0 %v251
        %271 = vmatpush.msra.mxu0 %v250
        %272 = vmatpush.msra.mxu0 %v249
        %273 = vmatmul.f32.gmra.mxu0 %v255
        %v274 = vpop.f32.mrf.mxu0
        %v275 = vadd.f32 0.0, %v274
        %276 = vdwg.mxu0
        %v277 = vmul.f32 %v275, 0.5
        %279 = vrot.lane.b32.xlu0 %v277, 124
        %v280 = vpop.permute.xlu0 %279
        %281 = vrot.lane.b32.xlu0 %v277, 120
        %v282 = vpop.permute.xlu0 %281
        %283 = vrot.lane.b32.xlu0 %v277, 116
        %v284 = vpop.permute.xlu0 %283
        %285 = vrot.lane.b32.xlu0 %v277, 112
        %v286 = vpop.permute.xlu0 %285
        %287 = vrot.lane.b32.xlu0 %v277, 108
        %v288 = vpop.permute.xlu0 %287
        %289 = vrot.lane.b32.xlu0 %v277, 104
        %v290 = vpop.permute.xlu0 %289
        %291 = vrot.lane.b32.xlu0 %v277, 100
        %v292 = vpop.permute.xlu0 %291
        %294 = vrot.lane.b32.xlu0 %v275, 124
        %v295 = vpop.permute.xlu0 %294
        %296 = vrot.lane.b32.xlu0 %v275, 120
        %v297 = vpop.permute.xlu0 %296
        %298 = vrot.lane.b32.xlu0 %v275, 116
        %v299 = vpop.permute.xlu0 %298
        %300 = vrot.lane.b32.xlu0 %v275, 112
        %v301 = vpop.permute.xlu0 %300
        %302 = vrot.lane.b32.xlu0 %v275, 108
        %v303 = vpop.permute.xlu0 %302
        %304 = vrot.lane.b32.xlu0 %v275, 104
        %v305 = vpop.permute.xlu0 %304
        %306 = vrot.lane.b32.xlu0 %v275, 100
        %v307 = vpop.permute.xlu0 %306
        %308 = vrot.lane.b32.xlu0 %v275, 96
        %v309 = vpop.permute.xlu0 %308
        %vm310 = vcmask 31744
        %v311 = vsel %vm310, %v277, 0
        %v313 = vsel %vm310, %v309, 0
        %315 = vmatpush.xpose.msra.mxu0 0.0
        %316 = vmatpush.xpose.msra.mxu0 0.0
        %317 = vmatpush.xpose.msra.mxu0 0.0
        %318 = vmatpush.xpose.msra.mxu0 0.0
        %319 = vmatpush.xpose.msra.mxu0 0.0
        %320 = vmatpush.xpose.msra.mxu0 0.0
        %321 = vmatpush.xpose.msra.mxu0 0.0
        %322 = vmatpush.xpose.msra.mxu0 0.0
        %323 = vmatpush.xpose.msra.mxu0 0.0
        %324 = vmatpush.xpose.msra.mxu0 0.0
        %325 = vmatpush.xpose.msra.mxu0 0.0
        %326 = vmatpush.xpose.msra.mxu0 0.0
        %327 = vmatpush.xpose.msra.mxu0 0.0
        %328 = vmatpush.xpose.msra.mxu0 0.0
        %329 = vmatpush.xpose.msra.mxu0 0.0
        %330 = vmatpush.xpose.msra.mxu0 %v313
        %331 = vmatmul.f32.gmra.mxu0 %v311
        %v332 = vpop.f32.mrf.mxu0
        %v333 = vadd.f32 0.0, %v332
        %334 = vdwg.mxu0
        %335 = vrot.lane.b32.xlu0 %v295, 96
        %v336 = vpop.permute.xlu0 %335
        %v337 = vsel %vm310, %v280, 0
        %v339 = vsel %vm310, %v336, 0
        %341 = vmatpush.xpose.msra.mxu0 0.0
        %342 = vmatpush.xpose.msra.mxu0 0.0
        %343 = vmatpush.xpose.msra.mxu0 0.0
        %344 = vmatpush.xpose.msra.mxu0 0.0
        %345 = vmatpush.xpose.msra.mxu0 0.0
        %346 = vmatpush.xpose.msra.mxu0 0.0
        %347 = vmatpush.xpose.msra.mxu0 0.0
        %348 = vmatpush.xpose.msra.mxu0 0.0
        %349 = vmatpush.xpose.msra.mxu0 0.0
        %350 = vmatpush.xpose.msra.mxu0 0.0
        %351 = vmatpush.xpose.msra.mxu0 0.0
        %352 = vmatpush.xpose.msra.mxu0 0.0
        %353 = vmatpush.xpose.msra.mxu0 0.0
        %354 = vmatpush.xpose.msra.mxu0 0.0
        %355 = vmatpush.xpose.msra.mxu0 0.0
        %356 = vmatpush.xpose.msra.mxu0 %v339
        %357 = vmatmul.f32.gmra.mxu0 %v337
        %v358 = vpop.f32.mrf.mxu0
        %v359 = vadd.f32 0.0, %v358
        %360 = vdwg.mxu0
        %361 = vrot.lane.b32.xlu0 %v297, 96
        %v362 = vpop.permute.xlu0 %361
        %v363 = vsel %vm310, %v282, 0
        %v365 = vsel %vm310, %v362, 0
        %367 = vmatpush.xpose.msra.mxu0 0.0
        %368 = vmatpush.xpose.msra.mxu0 0.0
        %369 = vmatpush.xpose.msra.mxu0 0.0
        %370 = vmatpush.xpose.msra.mxu0 0.0
        %371 = vmatpush.xpose.msra.mxu0 0.0
        %372 = vmatpush.xpose.msra.mxu0 0.0
        %373 = vmatpush.xpose.msra.mxu0 0.0
        %374 = vmatpush.xpose.msra.mxu0 0.0
        %375 = vmatpush.xpose.msra.mxu0 0.0
        %376 = vmatpush.xpose.msra.mxu0 0.0
        %377 = vmatpush.xpose.msra.mxu0 0.0
        %378 = vmatpush.xpose.msra.mxu0 0.0
        %379 = vmatpush.xpose.msra.mxu0 0.0
        %380 = vmatpush.xpose.msra.mxu0 0.0
        %381 = vmatpush.xpose.msra.mxu0 0.0
        %382 = vmatpush.xpose.msra.mxu0 %v365
        %383 = vmatmul.f32.gmra.mxu0 %v363
        %v384 = vpop.f32.mrf.mxu0
        %v385 = vadd.f32 0.0, %v384
        %386 = vdwg.mxu0
        %387 = vrot.lane.b32.xlu0 %v299, 96
        %v388 = vpop.permute.xlu0 %387
        %v389 = vsel %vm310, %v284, 0
        %v391 = vsel %vm310, %v388, 0
        %393 = vmatpush.xpose.msra.mxu0 0.0
        %394 = vmatpush.xpose.msra.mxu0 0.0
        %395 = vmatpush.xpose.msra.mxu0 0.0
        %396 = vmatpush.xpose.msra.mxu0 0.0
        %397 = vmatpush.xpose.msra.mxu0 0.0
        %398 = vmatpush.xpose.msra.mxu0 0.0
        %399 = vmatpush.xpose.msra.mxu0 0.0
        %400 = vmatpush.xpose.msra.mxu0 0.0
        %401 = vmatpush.xpose.msra.mxu0 0.0
        %402 = vmatpush.xpose.msra.mxu0 0.0
        %403 = vmatpush.xpose.msra.mxu0 0.0
        %404 = vmatpush.xpose.msra.mxu0 0.0
        %405 = vmatpush.xpose.msra.mxu0 0.0
        %406 = vmatpush.xpose.msra.mxu0 0.0
        %407 = vmatpush.xpose.msra.mxu0 0.0
        %408 = vmatpush.xpose.msra.mxu0 %v391
        %409 = vmatmul.f32.gmra.mxu0 %v389
        %v410 = vpop.f32.mrf.mxu0
        %v411 = vadd.f32 0.0, %v410
        %412 = vdwg.mxu0
        %413 = vrot.lane.b32.xlu0 %v301, 96
        %v414 = vpop.permute.xlu0 %413
        %v415 = vsel %vm310, %v286, 0
        %v417 = vsel %vm310, %v414, 0
        %419 = vmatpush.xpose.msra.mxu0 0.0
        %420 = vmatpush.xpose.msra.mxu0 0.0
        %421 = vmatpush.xpose.msra.mxu0 0.0
        %422 = vmatpush.xpose.msra.mxu0 0.0
        %423 = vmatpush.xpose.msra.mxu0 0.0
        %424 = vmatpush.xpose.msra.mxu0 0.0
        %425 = vmatpush.xpose.msra.mxu0 0.0
        %426 = vmatpush.xpose.msra.mxu0 0.0
        %427 = vmatpush.xpose.msra.mxu0 0.0
        %428 = vmatpush.xpose.msra.mxu0 0.0
        %429 = vmatpush.xpose.msra.mxu0 0.0
        %430 = vmatpush.xpose.msra.mxu0 0.0
        %431 = vmatpush.xpose.msra.mxu0 0.0
        %432 = vmatpush.xpose.msra.mxu0 0.0
        %433 = vmatpush.xpose.msra.mxu0 0.0
        %434 = vmatpush.xpose.msra.mxu0 %v417
        %435 = vmatmul.f32.gmra.mxu0 %v415
        %v436 = vpop.f32.mrf.mxu0
        %v437 = vadd.f32 0.0, %v436
        %438 = vdwg.mxu0
        %439 = vrot.lane.b32.xlu0 %v303, 96
        %v440 = vpop.permute.xlu0 %439
        %v441 = vsel %vm310, %v288, 0
        %v443 = vsel %vm310, %v440, 0
        %445 = vmatpush.xpose.msra.mxu0 0.0
        %446 = vmatpush.xpose.msra.mxu0 0.0
        %447 = vmatpush.xpose.msra.mxu0 0.0
        %448 = vmatpush.xpose.msra.mxu0 0.0
        %449 = vmatpush.xpose.msra.mxu0 0.0
        %450 = vmatpush.xpose.msra.mxu0 0.0
        %451 = vmatpush.xpose.msra.mxu0 0.0
        %452 = vmatpush.xpose.msra.mxu0 0.0
        %453 = vmatpush.xpose.msra.mxu0 0.0
        %454 = vmatpush.xpose.msra.mxu0 0.0
        %455 = vmatpush.xpose.msra.mxu0 0.0
        %456 = vmatpush.xpose.msra.mxu0 0.0
        %457 = vmatpush.xpose.msra.mxu0 0.0
        %458 = vmatpush.xpose.msra.mxu0 0.0
        %459 = vmatpush.xpose.msra.mxu0 0.0
        %460 = vmatpush.xpose.msra.mxu0 %v443
        %461 = vmatmul.f32.gmra.mxu0 %v441
        %v462 = vpop.f32.mrf.mxu0
        %v463 = vadd.f32 0.0, %v462
        %464 = vdwg.mxu0
        %465 = vrot.lane.b32.xlu0 %v305, 96
        %v466 = vpop.permute.xlu0 %465
        %v467 = vsel %vm310, %v290, 0
        %v469 = vsel %vm310, %v466, 0
        %471 = vmatpush.xpose.msra.mxu0 0.0
        %472 = vmatpush.xpose.msra.mxu0 0.0
        %473 = vmatpush.xpose.msra.mxu0 0.0
        %474 = vmatpush.xpose.msra.mxu0 0.0
        %475 = vmatpush.xpose.msra.mxu0 0.0
        %476 = vmatpush.xpose.msra.mxu0 0.0
        %477 = vmatpush.xpose.msra.mxu0 0.0
        %478 = vmatpush.xpose.msra.mxu0 0.0
        %479 = vmatpush.xpose.msra.mxu0 0.0
        %480 = vmatpush.xpose.msra.mxu0 0.0
        %481 = vmatpush.xpose.msra.mxu0 0.0
        %482 = vmatpush.xpose.msra.mxu0 0.0
        %483 = vmatpush.xpose.msra.mxu0 0.0
        %484 = vmatpush.xpose.msra.mxu0 0.0
        %485 = vmatpush.xpose.msra.mxu0 0.0
        %486 = vmatpush.xpose.msra.mxu0 %v469
        %487 = vmatmul.f32.gmra.mxu0 %v467
        %v488 = vpop.f32.mrf.mxu0
        %v489 = vadd.f32 0.0, %v488
        %490 = vdwg.mxu0
        %491 = vrot.lane.b32.xlu0 %v307, 96
        %v492 = vpop.permute.xlu0 %491
        %v493 = vsel %vm310, %v292, 0
        %v495 = vsel %vm310, %v492, 0
        %497 = vmatpush.xpose.msra.mxu0 0.0
        %498 = vmatpush.xpose.msra.mxu0 0.0
        %499 = vmatpush.xpose.msra.mxu0 0.0
        %500 = vmatpush.xpose.msra.mxu0 0.0
        %501 = vmatpush.xpose.msra.mxu0 0.0
        %502 = vmatpush.xpose.msra.mxu0 0.0
        %503 = vmatpush.xpose.msra.mxu0 0.0
        %504 = vmatpush.xpose.msra.mxu0 0.0
        %505 = vmatpush.xpose.msra.mxu0 0.0
        %506 = vmatpush.xpose.msra.mxu0 0.0
        %507 = vmatpush.xpose.msra.mxu0 0.0
        %508 = vmatpush.xpose.msra.mxu0 0.0
        %509 = vmatpush.xpose.msra.mxu0 0.0
        %510 = vmatpush.xpose.msra.mxu0 0.0
        %511 = vmatpush.xpose.msra.mxu0 0.0
        %512 = vmatpush.xpose.msra.mxu0 %v495
        %513 = vmatmul.f32.gmra.mxu0 %v493
        %v514 = vpop.f32.mrf.mxu0
        %v515 = vadd.f32 0.0, %v514
        %516 = vdwg.mxu0
        %vm517 = vcmask 64512
        %v518 = vsel %vm517, %v333, -inf
        %519 = vmax.xlane.f32.xlu0 %v518
        %v520 = vpop.xlane.xlu0 %519
        %v521 = vsel %vm517, %v359, -inf
        %522 = vmax.xlane.f32.xlu0 %v521
        %v523 = vpop.xlane.xlu0 %522
        %v524 = vsel %vm517, %v385, -inf
        %525 = vmax.xlane.f32.xlu0 %v524
        %v526 = vpop.xlane.xlu0 %525
        %v527 = vsel %vm517, %v411, -inf
        %528 = vmax.xlane.f32.xlu0 %v527
        %v529 = vpop.xlane.xlu0 %528
        %v530 = vsel %vm517, %v437, -inf
        %531 = vmax.xlane.f32.xlu0 %v530
        %v532 = vpop.xlane.xlu0 %531
        %v533 = vsel %vm517, %v463, -inf
        %534 = vmax.xlane.f32.xlu0 %v533
        %v535 = vpop.xlane.xlu0 %534
        %v536 = vsel %vm517, %v489, -inf
        %537 = vmax.xlane.f32.xlu0 %v536
        %v538 = vpop.xlane.xlu0 %537
        %v539 = vsel %vm517, %v515, -inf
        %540 = vmax.xlane.f32.xlu0 %v539
        %v541 = vpop.xlane.xlu0 %540
        %v542 = vsub.f32 %v333, %v520
        %v543 = vsub.f32 %v359, %v523
        %v544 = vsub.f32 %v385, %v526
        %v545 = vsub.f32 %v411, %v529
        %v546 = vsub.f32 %v437, %v532
        %v547 = vsub.f32 %v463, %v535
        %v548 = vsub.f32 %v489, %v538
        %v549 = vsub.f32 %v515, %v541
        %v550 = vmul.f32 %v542, 1.442695
        %v551 = vpow.pop %v550
        %v552 = vmul.f32 %v543, 1.442695
        %v553 = vpow.pop %v552
        %v554 = vmul.f32 %v544, 1.442695
        %v555 = vpow.pop %v554
        %v556 = vmul.f32 %v545, 1.442695
        %v557 = vpow.pop %v556
        %v558 = vmul.f32 %v546, 1.442695
        %v559 = vpow.pop %v558
        %v560 = vmul.f32 %v547, 1.442695
        %v561 = vpow.pop %v560
        %v562 = vmul.f32 %v548, 1.442695
        %v563 = vpow.pop %v562
        %v564 = vmul.f32 %v549, 1.442695
        %v565 = vpow.pop %v564
        %v566 = vsel %vm517, %v551, 0.0
        %567 = vadd.xlane.f32.xlu0 %v566
        %v568 = vpop.xlane.xlu0 %567
        %v569 = vsel %vm517, %v553, 0.0
        %570 = vadd.xlane.f32.xlu0 %v569
        %v571 = vpop.xlane.xlu0 %570
        %v572 = vsel %vm517, %v555, 0.0
        %573 = vadd.xlane.f32.xlu0 %v572
        %v574 = vpop.xlane.xlu0 %573
        %v575 = vsel %vm517, %v557, 0.0
        %576 = vadd.xlane.f32.xlu0 %v575
        %v577 = vpop.xlane.xlu0 %576
        %v578 = vsel %vm517, %v559, 0.0
        %579 = vadd.xlane.f32.xlu0 %v578
        %v580 = vpop.xlane.xlu0 %579
        %v581 = vsel %vm517, %v561, 0.0
        %582 = vadd.xlane.f32.xlu0 %v581
        %v583 = vpop.xlane.xlu0 %582
        %v584 = vsel %vm517, %v563, 0.0
        %585 = vadd.xlane.f32.xlu0 %v584
        %v586 = vpop.xlane.xlu0 %585
        %v587 = vsel %vm517, %v565, 0.0
        %588 = vadd.xlane.f32.xlu0 %v587
        %v589 = vpop.xlane.xlu0 %588
        %590 = vrot.lane.b32.xlu0 %v275, 64
        %v591 = vpop.permute.xlu0 %590
        %v594 = vsel %vm517, %v551, 0
        %596 = vmatpush.msra.mxu0 0.0
        %597 = vmatpush.msra.mxu0 0.0
        %598 = vmatpush.msra.mxu0 0.0
        %599 = vmatpush.msra.mxu0 0.0
        %600 = vmatpush.msra.mxu0 0.0
        %601 = vmatpush.msra.mxu0 0.0
        %602 = vmatpush.msra.mxu0 0.0
        %603 = vmatpush.msra.mxu0 0.0
        %604 = vmatpush.msra.mxu0 0.0
        %605 = vmatpush.msra.mxu0 0.0
        %606 = vmatpush.msra.mxu0 0.0
        %607 = vmatpush.msra.mxu0 0.0
        %608 = vmatpush.msra.mxu0 0.0
        %609 = vmatpush.msra.mxu0 0.0
        %610 = vmatpush.msra.mxu0 0.0
        %611 = vmatpush.msra.mxu0 %v591
        %612 = vmatmul.f32.gmra.mxu0 %v594
        %v613 = vpop.f32.mrf.mxu0
        %v614 = vadd.f32 0.0, %v613
        %615 = vdwg.mxu0
        %616 = vrot.lane.b32.xlu0 %v295, 64
        %v617 = vpop.permute.xlu0 %616
        %v620 = vsel %vm517, %v553, 0
        %622 = vmatpush.msra.mxu0 0.0
        %623 = vmatpush.msra.mxu0 0.0
        %624 = vmatpush.msra.mxu0 0.0
        %625 = vmatpush.msra.mxu0 0.0
        %626 = vmatpush.msra.mxu0 0.0
        %627 = vmatpush.msra.mxu0 0.0
        %628 = vmatpush.msra.mxu0 0.0
        %629 = vmatpush.msra.mxu0 0.0
        %630 = vmatpush.msra.mxu0 0.0
        %631 = vmatpush.msra.mxu0 0.0
        %632 = vmatpush.msra.mxu0 0.0
        %633 = vmatpush.msra.mxu0 0.0
        %634 = vmatpush.msra.mxu0 0.0
        %635 = vmatpush.msra.mxu0 0.0
        %636 = vmatpush.msra.mxu0 0.0
        %637 = vmatpush.msra.mxu0 %v617
        %638 = vmatmul.f32.gmra.mxu0 %v620
        %v639 = vpop.f32.mrf.mxu0
        %v640 = vadd.f32 0.0, %v639
        %641 = vdwg.mxu0
        %642 = vrot.lane.b32.xlu0 %v297, 64
        %v643 = vpop.permute.xlu0 %642
        %v646 = vsel %vm517, %v555, 0
        %648 = vmatpush.msra.mxu0 0.0
        %649 = vmatpush.msra.mxu0 0.0
        %650 = vmatpush.msra.mxu0 0.0
        %651 = vmatpush.msra.mxu0 0.0
        %652 = vmatpush.msra.mxu0 0.0
        %653 = vmatpush.msra.mxu0 0.0
        %654 = vmatpush.msra.mxu0 0.0
        %655 = vmatpush.msra.mxu0 0.0
        %656 = vmatpush.msra.mxu0 0.0
        %657 = vmatpush.msra.mxu0 0.0
        %658 = vmatpush.msra.mxu0 0.0
        %659 = vmatpush.msra.mxu0 0.0
        %660 = vmatpush.msra.mxu0 0.0
        %661 = vmatpush.msra.mxu0 0.0
        %662 = vmatpush.msra.mxu0 0.0
        %663 = vmatpush.msra.mxu0 %v643
        %664 = vmatmul.f32.gmra.mxu0 %v646
        %v665 = vpop.f32.mrf.mxu0
        %v666 = vadd.f32 0.0, %v665
        %667 = vdwg.mxu0
        %668 = vrot.lane.b32.xlu0 %v299, 64
        %v669 = vpop.permute.xlu0 %668
        %v672 = vsel %vm517, %v557, 0
        %674 = vmatpush.msra.mxu0 0.0
        %675 = vmatpush.msra.mxu0 0.0
        %676 = vmatpush.msra.mxu0 0.0
        %677 = vmatpush.msra.mxu0 0.0
        %678 = vmatpush.msra.mxu0 0.0
        %679 = vmatpush.msra.mxu0 0.0
        %680 = vmatpush.msra.mxu0 0.0
        %681 = vmatpush.msra.mxu0 0.0
        %682 = vmatpush.msra.mxu0 0.0
        %683 = vmatpush.msra.mxu0 0.0
        %684 = vmatpush.msra.mxu0 0.0
        %685 = vmatpush.msra.mxu0 0.0
        %686 = vmatpush.msra.mxu0 0.0
        %687 = vmatpush.msra.mxu0 0.0
        %688 = vmatpush.msra.mxu0 0.0
        %689 = vmatpush.msra.mxu0 %v669
        %690 = vmatmul.f32.gmra.mxu0 %v672
        %v691 = vpop.f32.mrf.mxu0
        %v692 = vadd.f32 0.0, %v691
        %693 = vdwg.mxu0
        %694 = vrot.lane.b32.xlu0 %v301, 64
        %v695 = vpop.permute.xlu0 %694
        %v698 = vsel %vm517, %v559, 0
        %700 = vmatpush.msra.mxu0 0.0
        %701 = vmatpush.msra.mxu0 0.0
        %702 = vmatpush.msra.mxu0 0.0
        %703 = vmatpush.msra.mxu0 0.0
        %704 = vmatpush.msra.mxu0 0.0
        %705 = vmatpush.msra.mxu0 0.0
        %706 = vmatpush.msra.mxu0 0.0
        %707 = vmatpush.msra.mxu0 0.0
        %708 = vmatpush.msra.mxu0 0.0
        %709 = vmatpush.msra.mxu0 0.0
        %710 = vmatpush.msra.mxu0 0.0
        %711 = vmatpush.msra.mxu0 0.0
        %712 = vmatpush.msra.mxu0 0.0
        %713 = vmatpush.msra.mxu0 0.0
        %714 = vmatpush.msra.mxu0 0.0
        %715 = vmatpush.msra.mxu0 %v695
        %716 = vmatmul.f32.gmra.mxu0 %v698
        %v717 = vpop.f32.mrf.mxu0
        %v718 = vadd.f32 0.0, %v717
        %719 = vdwg.mxu0
        %720 = vrot.lane.b32.xlu0 %v303, 64
        %v721 = vpop.permute.xlu0 %720
        %v724 = vsel %vm517, %v561, 0
        %726 = vmatpush.msra.mxu0 0.0
        %727 = vmatpush.msra.mxu0 0.0
        %728 = vmatpush.msra.mxu0 0.0
        %729 = vmatpush.msra.mxu0 0.0
        %730 = vmatpush.msra.mxu0 0.0
        %731 = vmatpush.msra.mxu0 0.0
        %732 = vmatpush.msra.mxu0 0.0
        %733 = vmatpush.msra.mxu0 0.0
        %734 = vmatpush.msra.mxu0 0.0
        %735 = vmatpush.msra.mxu0 0.0
        %736 = vmatpush.msra.mxu0 0.0
        %737 = vmatpush.msra.mxu0 0.0
        %738 = vmatpush.msra.mxu0 0.0
        %739 = vmatpush.msra.mxu0 0.0
        %740 = vmatpush.msra.mxu0 0.0
        %741 = vmatpush.msra.mxu0 %v721
        %742 = vmatmul.f32.gmra.mxu0 %v724
        %v743 = vpop.f32.mrf.mxu0
        %v744 = vadd.f32 0.0, %v743
        %745 = vdwg.mxu0
        %746 = vrot.lane.b32.xlu0 %v305, 64
        %v747 = vpop.permute.xlu0 %746
        %v750 = vsel %vm517, %v563, 0
        %752 = vmatpush.msra.mxu0 0.0
        %753 = vmatpush.msra.mxu0 0.0
        %754 = vmatpush.msra.mxu0 0.0
        %755 = vmatpush.msra.mxu0 0.0
        %756 = vmatpush.msra.mxu0 0.0
        %757 = vmatpush.msra.mxu0 0.0
        %758 = vmatpush.msra.mxu0 0.0
        %759 = vmatpush.msra.mxu0 0.0
        %760 = vmatpush.msra.mxu0 0.0
        %761 = vmatpush.msra.mxu0 0.0
        %762 = vmatpush.msra.mxu0 0.0
        %763 = vmatpush.msra.mxu0 0.0
        %764 = vmatpush.msra.mxu0 0.0
        %765 = vmatpush.msra.mxu0 0.0
        %766 = vmatpush.msra.mxu0 0.0
        %767 = vmatpush.msra.mxu0 %v747
        %768 = vmatmul.f32.gmra.mxu0 %v750
        %v769 = vpop.f32.mrf.mxu0
        %v770 = vadd.f32 0.0, %v769
        %771 = vdwg.mxu0
        %772 = vrot.lane.b32.xlu0 %v307, 64
        %v773 = vpop.permute.xlu0 %772
        %v776 = vsel %vm517, %v565, 0
        %778 = vmatpush.msra.mxu0 0.0
        %779 = vmatpush.msra.mxu0 0.0
        %780 = vmatpush.msra.mxu0 0.0
        %781 = vmatpush.msra.mxu0 0.0
        %782 = vmatpush.msra.mxu0 0.0
        %783 = vmatpush.msra.mxu0 0.0
        %784 = vmatpush.msra.mxu0 0.0
        %785 = vmatpush.msra.mxu0 0.0
        %786 = vmatpush.msra.mxu0 0.0
        %787 = vmatpush.msra.mxu0 0.0
        %788 = vmatpush.msra.mxu0 0.0
        %789 = vmatpush.msra.mxu0 0.0
        %790 = vmatpush.msra.mxu0 0.0
        %791 = vmatpush.msra.mxu0 0.0
        %792 = vmatpush.msra.mxu0 0.0
        %793 = vmatpush.msra.mxu0 %v773
        %794 = vmatmul.f32.gmra.mxu0 %v776
        %v795 = vpop.f32.mrf.mxu0
        %v796 = vadd.f32 0.0, %v795
        %797 = vdwg.mxu0
        %v798 = vrcp.pop %v568
        %v799 = vmul.f32 %v568, %v798
        %v800 = vsub.f32 1.0, %v799
        %v801 = vmul.f32 %v798, %v800
        %v802 = vadd.f32 %v798, %v801
        %vm803 = vweird.f32 %v568
        %vm804 = vweird.f32 %v798
        %vm805 = vmor %vm803, %vm804
        %v806 = vsel %vm805, %v798, %v802
        %v807 = vand.u32 2147483647, %v568
        %vm808 = vcmp.eq.f32.partialorder %v807, 8.507059e+37
        %v809 = vand.u32 %v568, 2147483648
        %v810 = vor.u32 1.1754944e-38, %v809
        %v811 = vsel %vm808, %v810, %v806
        %v812 = vrcp.pop %v571
        %v813 = vmul.f32 %v571, %v812
        %v814 = vsub.f32 1.0, %v813
        %v815 = vmul.f32 %v812, %v814
        %v816 = vadd.f32 %v812, %v815
        %vm817 = vweird.f32 %v571
        %vm818 = vweird.f32 %v812
        %vm819 = vmor %vm817, %vm818
        %v820 = vsel %vm819, %v812, %v816
        %v821 = vand.u32 2147483647, %v571
        %vm822 = vcmp.eq.f32.partialorder %v821, 8.507059e+37
        %v823 = vand.u32 %v571, 2147483648
        %v824 = vor.u32 1.1754944e-38, %v823
        %v825 = vsel %vm822, %v824, %v820
        %v826 = vrcp.pop %v574
        %v827 = vmul.f32 %v574, %v826
        %v828 = vsub.f32 1.0, %v827
        %v829 = vmul.f32 %v826, %v828
        %v830 = vadd.f32 %v826, %v829
        %vm831 = vweird.f32 %v574
        %vm832 = vweird.f32 %v826
        %vm833 = vmor %vm831, %vm832
        %v834 = vsel %vm833, %v826, %v830
        %v835 = vand.u32 2147483647, %v574
        %vm836 = vcmp.eq.f32.partialorder %v835, 8.507059e+37
        %v837 = vand.u32 %v574, 2147483648
        %v838 = vor.u32 1.1754944e-38, %v837
        %v839 = vsel %vm836, %v838, %v834
        %v840 = vrcp.pop %v577
        %v841 = vmul.f32 %v577, %v840
        %v842 = vsub.f32 1.0, %v841
        %v843 = vmul.f32 %v840, %v842
        %v844 = vadd.f32 %v840, %v843
        %vm845 = vweird.f32 %v577
        %vm846 = vweird.f32 %v840
        %vm847 = vmor %vm845, %vm846
        %v848 = vsel %vm847, %v840, %v844
        %v849 = vand.u32 2147483647, %v577
        %vm850 = vcmp.eq.f32.partialorder %v849, 8.507059e+37
        %v851 = vand.u32 %v577, 2147483648
        %v852 = vor.u32 1.1754944e-38, %v851
        %v853 = vsel %vm850, %v852, %v848
        %v854 = vrcp.pop %v580
        %v855 = vmul.f32 %v580, %v854
        %v856 = vsub.f32 1.0, %v855
        %v857 = vmul.f32 %v854, %v856
        %v858 = vadd.f32 %v854, %v857
        %vm859 = vweird.f32 %v580
        %vm860 = vweird.f32 %v854
        %vm861 = vmor %vm859, %vm860
        %v862 = vsel %vm861, %v854, %v858
        %v863 = vand.u32 2147483647, %v580
        %vm864 = vcmp.eq.f32.partialorder %v863, 8.507059e+37
        %v865 = vand.u32 %v580, 2147483648
        %v866 = vor.u32 1.1754944e-38, %v865
        %v867 = vsel %vm864, %v866, %v862
        %v868 = vrcp.pop %v583
        %v869 = vmul.f32 %v583, %v868
        %v870 = vsub.f32 1.0, %v869
        %v871 = vmul.f32 %v868, %v870
        %v872 = vadd.f32 %v868, %v871
        %vm873 = vweird.f32 %v583
        %vm874 = vweird.f32 %v868
        %vm875 = vmor %vm873, %vm874
        %v876 = vsel %vm875, %v868, %v872
        %v877 = vand.u32 2147483647, %v583
        %vm878 = vcmp.eq.f32.partialorder %v877, 8.507059e+37
        %v879 = vand.u32 %v583, 2147483648
        %v880 = vor.u32 1.1754944e-38, %v879
        %v881 = vsel %vm878, %v880, %v876
        %v882 = vrcp.pop %v586
        %v883 = vmul.f32 %v586, %v882
        %v884 = vsub.f32 1.0, %v883
        %v885 = vmul.f32 %v882, %v884
        %v886 = vadd.f32 %v882, %v885
        %vm887 = vweird.f32 %v586
        %vm888 = vweird.f32 %v882
        %vm889 = vmor %vm887, %vm888
        %v890 = vsel %vm889, %v882, %v886
        %v891 = vand.u32 2147483647, %v586
        %vm892 = vcmp.eq.f32.partialorder %v891, 8.507059e+37
        %v893 = vand.u32 %v586, 2147483648
        %v894 = vor.u32 1.1754944e-38, %v893
        %v895 = vsel %vm892, %v894, %v890
        %v896 = vrcp.pop %v589
        %v897 = vmul.f32 %v589, %v896
        %v898 = vsub.f32 1.0, %v897
        %v899 = vmul.f32 %v896, %v898
        %v900 = vadd.f32 %v896, %v899
        %vm901 = vweird.f32 %v589
        %vm902 = vweird.f32 %v896
        %vm903 = vmor %vm901, %vm902
        %v904 = vsel %vm903, %v896, %v900
        %v905 = vand.u32 2147483647, %v589
        %vm906 = vcmp.eq.f32.partialorder %v905, 8.507059e+37
        %v907 = vand.u32 %v589, 2147483648
        %v908 = vor.u32 1.1754944e-38, %v907
        %v909 = vsel %vm906, %v908, %v904
        %v910 = vmul.f32 %v614, %v811
        %v911 = vmul.f32 %v640, %v825
        %v912 = vmul.f32 %v666, %v839
        %v913 = vmul.f32 %v692, %v853
        %v914 = vmul.f32 %v718, %v867
        %v915 = vmul.f32 %v744, %v881
        %v916 = vmul.f32 %v770, %v895
        %v917 = vmul.f32 %v796, %v909
        %918 = vst.msk [vmem:[#allocation2] sm:$0xff] %vm310, %v910
        %920 = vrot.lane.b32.xlu0 %v911, 4
        %v921 = vpop.permute.xlu0 %920
        %vm923 = vcmask 64544
        %924 = vst.msk [vmem:[#allocation2] sm:$0xff] %vm923, %v921
        %926 = vrot.lane.b32.xlu0 %v912, 8
        %v927 = vpop.permute.xlu0 %926
        %vm929 = vcmask 97344
        %930 = vst.msk [vmem:[#allocation2] sm:$0xff] %vm929, %v927
        %932 = vrot.lane.b32.xlu0 %v913, 12
        %v933 = vpop.permute.xlu0 %932
        %vm935 = vcmask 130144
        %936 = vst.msk [vmem:[#allocation2] sm:$0xff] %vm935, %v933
        %938 = vrot.lane.b32.xlu0 %v914, 16
        %v939 = vpop.permute.xlu0 %938
        %vm941 = vcmask 162944
        %942 = vst.msk [vmem:[#allocation2] sm:$0xff] %vm941, %v939
        %944 = vrot.lane.b32.xlu0 %v915, 20
        %v945 = vpop.permute.xlu0 %944
        %vm947 = vcmask 195744
        %948 = vst.msk [vmem:[#allocation2] sm:$0xff] %vm947, %v945
        %950 = vrot.lane.b32.xlu0 %v916, 24
        %v951 = vpop.permute.xlu0 %950
        %vm953 = vcmask 228544
        %954 = vst.msk [vmem:[#allocation2] sm:$0xff] %vm953, %v951
        %956 = vrot.lane.b32.xlu0 %v917, 28
        %v957 = vpop.permute.xlu0 %956
        %vm959 = vcmask 261344
        %960 = vst.msk [vmem:[#allocation2] sm:$0xff] %vm959, %v957
        %v961 = vld [vmem:[#allocation2] sm:$0xff]
        %v962 = vld [vmem:[#allocation8] sm:$0xff]
        %v963 = vld [vmem:[#allocation8 + $0x8] sm:$0xff]
        %v964 = vld [vmem:[#allocation8 + $0x10] sm:$0xff]
        %v965 = vld [vmem:[#allocation8 + $0x18] sm:$0xff]
        %v966 = vld [vmem:[%s3] sm:$0x1]
        %v968 = vperm.slane %v966, 0
        %v971 = vsel %vm253, %v961, 0
        %973 = vmatpush.msra.mxu0 0.0
        %974 = vmatpush.msra.mxu0 0.0
        %975 = vmatpush.msra.mxu0 0.0
        %976 = vmatpush.msra.mxu0 0.0
        %977 = vmatpush.msra.mxu0 0.0
        %978 = vmatpush.msra.mxu0 0.0
        %979 = vmatpush.msra.mxu0 0.0
        %980 = vmatpush.msra.mxu0 0.0
        %981 = vmatpush.msra.mxu0 0.0
        %982 = vmatpush.msra.mxu0 0.0
        %983 = vmatpush.msra.mxu0 0.0
        %984 = vmatpush.msra.mxu0 0.0
        %985 = vmatpush.msra.mxu0 %v965
        %986 = vmatpush.msra.mxu0 %v964
        %987 = vmatpush.msra.mxu0 %v963
        %988 = vmatpush.msra.mxu0 %v962
        %989 = vmatmul.f32.gmra.mxu0 %v971
        %v990 = vpop.f32.mrf.mxu0
        %v991 = vadd.f32 %v968, %v990
        %992 = vdwg.mxu0
        %993 = vst.msk [vmem:[%s247] sm:$0xff] %vm253, %v991
        %s994 = sand.u32 %s119, 1
        %s995 = scalar_lea.sflag [#allocation5], %s994
        %s996 = sand.u32 %s119, 1
        %s997 = smul.addr %s996, 8
        %s998 = scalar_lea.vmem [#allocation9], %s997
        // Predicated region
        $region49: #{tpu_custom_call.1} parent=35 // pred_check
          %p999 = pneg %p129
        $region50: #{tpu_custom_call.1} parent=35 // pred_check_branch
          %1001 = sbr.rel (%p999) target = $region52
        $region51: #{tpu_custom_call.1} parent=35 // pred_region
          %1003 = vsyncadd %s995, 0
          %s1004 = smul.addr %s22, 8
          %s1005 = scalar_lea.hbm %s4, %s1004
          %s1007 = sshll.u32 %s998, 4
          %s1008 = int_to_ptr.vmem [resolvable:$true] %s1007
          %s1009 = sshll.u32 %s1005, 4
          %s1010 = int_to_ptr.hbm [resolvable:$true] %s1009
          %1012 = dma.vmem_to_hbm [thread:$0]  %s1008, 128, %s1010, %s995
        $region52: #{tpu_custom_call.1} parent=35 // pred_fallthru
          _
      $region36: #{tpu_custom_call.1} parent=5 // pred_fallthru
        _
      %p1013 = scmp.le.s32.totalorder 2, %s17
      // Predicated region
      $region53: #{tpu_custom_call.1} parent=5 // pred_check
        %p1014 = pneg %p1013
      $region54: #{tpu_custom_call.1} parent=5 // pred_check_branch
        %1016 = sbr.rel (%p1014) target = $region56
      $region55: #{tpu_custom_call.1} parent=5 // pred_region
        %s1017 = ssub.s32 %s17, 2
        // Predicated region
        $region57: #{tpu_custom_call.1} parent=55 // pred_check
          %p1018 = pneg %p135
        $region58: #{tpu_custom_call.1} parent=55 // pred_check_branch
          %1020 = sbr.rel (%p1018) target = $region60
        $region59: #{tpu_custom_call.1} parent=55 // pred_region
          %s1021 = sand.u32 %s120, 1
          %s1022 = scalar_lea.sflag [#allocation5], %s1021
          %s1023 = sand.u32 %s120, 1
          %s1024 = smul.addr %s1023, 8
          %s1025 = scalar_lea.vmem [#allocation9], %s1024
          %1027 = dma.done %s1022, 128
        $region60: #{tpu_custom_call.1} parent=55 // pred_fallthru
          _
      $region56: #{tpu_custom_call.1} parent=5 // pred_fallthru
        _
    $region6: #{tpu_custom_call.1} parent=1 // loop_footer
      %s21 = sadd.s32 1, %s17
    $region7: #{tpu_custom_call.1} parent=1 // loop_footer_branch
      %16 = sbr.rel target = $region3
    $region8: #{tpu_custom_call.1} parent=1 // loop_exit
      _
    %1028 = vsyncpa [#allocation4], 1
    %s1029 = scalar_lea.sflag [#allocation4], 1
    %1030 = vsyncpa %s1029, 1
    %1031 = vsyncpa [#allocation7], 1
    %1032 = vsyncpa [#allocation5], 1
    %s1033 = scalar_lea.sflag [#allocation5], 1
    %1034 = vsyncpa %s1033, 1

</llo_original>
